<compile_context>
chip_gen: v5e
topology: v5e:2x2
jax: 0.10.0
libtpu: 0.0.40
codegen_flags: <defaults>
</compile_context>

<pallas_src>
import math
import functools

import jax
import jax.numpy as jnp
from jax import lax
from jax.experimental import pallas as pl
from jax.experimental.pallas import tpu as pltpu


def _self_attention_kernel(
    x_ref,       # (bb, L, C)   f32   (cast to bf16 in-kernel)
    wqkv_ref,    # (C, 3E)      bf16  pre-folded, pre-transposed; q part pre-scaled
    bqkv_ref,    # (1, 3E)      f32
    wo_ref,      # (E, E)       bf16  out-proj, pre-transposed
    bo_ref,      # (1, E)       f32
    out_ref,     # (bb, L, E)   f32   attention output
    attw_ref,    # (bb, L, L)   f32   head-averaged attention weights
    *, num_heads: int, embed_dim: int,
):
    bb, L, C = x_ref.shape
    E = embed_dim
    hd = E // num_heads

    # In-kernel cast (VPU, hidden under the QKV matmul); flatten batch into the M dim
    # so the fused projection is one (bb*L, C) @ (C, 3E) MXU matmul.
    x = x_ref[...].astype(jnp.bfloat16).reshape(bb * L, C)
    qkv = jnp.dot(x, wqkv_ref[...], preferred_element_type=jnp.float32) + bqkv_ref[...]

    # Cast once to bf16 so the score / context matmuls are MXU-native bf16 x bf16.
    q2 = qkv[:, :E].astype(jnp.bfloat16)           # already scaled by 1/sqrt(hd)
    k2 = qkv[:, E:2 * E].astype(jnp.bfloat16)
    v2 = qkv[:, 2 * E:].astype(jnp.bfloat16)

    inv_h = 1.0 / num_heads
    for b in range(bb):                            # static unroll, bb is tiny
        r0 = b * L
        out_acc = jnp.zeros((L, E), dtype=jnp.float32)
        w_sum = jnp.zeros((L, L), dtype=jnp.float32)
        for h in range(num_heads):                 # static unroll, num_heads is small
            lo = h * hd
            qh = q2[r0:r0 + L, lo:lo + hd]
            kh = k2[r0:r0 + L, lo:lo + hd]
            vh = v2[r0:r0 + L, lo:lo + hd]

            # scores = qh @ kh^T without materializing a transpose (bf16 in, f32 acc).
            s = lax.dot_general(qh, kh, (((1,), (1,)), ((), ())),
                                preferred_element_type=jnp.float32)
            s = s - jnp.max(s, axis=-1, keepdims=True)
            e = jnp.exp(s)
            p = e / jnp.sum(e, axis=-1, keepdims=True)   # exact: weights are user-visible
            w_sum = w_sum + p

            # Per-head context projected straight through the matching sublane slice of
            # the pre-transposed out-proj weight -> accumulate in registers; no VMEM
            # scratch, no masked lane-slice stores.
            ctx_h = jnp.dot(p.astype(jnp.bfloat16), vh,
                            preferred_element_type=jnp.float32)          # (L, hd)
            out_acc = out_acc + jnp.dot(ctx_h.astype(jnp.bfloat16),
                                        wo_ref[lo:lo + hd, :],
                                        preferred_element_type=jnp.float32)

        out_ref[b] = out_acc + bo_ref[...]
        attw_ref[b] = w_sum * inv_h


def _fold_params(params, num_heads):
    """Fold the 3 outer linears with the MHA in-projection, pre-transpose everything,
    fold the softmax scale into the query path, and cast matmul weights to bf16."""
    E, C = params["wq"].shape
    hd = E // num_heads
    scale = 1.0 / math.sqrt(hd)

    # q2 = (x@Wq^T + bq)@Wiq^T + biq  ==  x @ (Wiq@Wq)^T + (Wiq@bq + biq)
    wq_eff = params["wiq"] @ params["wq"]                           # (E, C)
    wk_eff = params["wik"] @ params["wk"]
    wv_eff = params["wiv"] @ params["wv"]
    bq_eff = params["bq"][0] @ params["wiq"].T + params["biq"][0]   # (E,)
    bk_eff = params["bk"][0] @ params["wik"].T + params["bik"][0]
    bv_eff = params["bv"][0] @ params["wiv"].T + params["biv"][0]

    w_qkv = jnp.concatenate([wq_eff.T * scale, wk_eff.T, wv_eff.T], axis=1)  # (C, 3E)
    b_qkv = jnp.concatenate([bq_eff * scale, bk_eff, bv_eff])[None, :]       # (1, 3E)
    w_o = params["wo"].T                                                     # (E, E)
    b_o = params["bo"]                                                       # (1, E)

    return (w_qkv.astype(jnp.bfloat16), b_qkv.astype(jnp.float32),
            w_o.astype(jnp.bfloat16), b_o.astype(jnp.float32))


def self_attention_forward(x, params, *, num_heads, batch_block=None):
    """x: (B, L, C) float32. Returns (attn_output (B,L,E), attn_weights (B,L,L))."""
    B, L, C = x.shape
    E = params["wq"].shape[0]
    w_qkv, b_qkv, w_o, b_o = _fold_params(params, num_heads)

    if batch_block is None:
        # 2 parallel grid steps when B splits evenly (keeps both v7x TCs busy);
        # otherwise a single step (no sequential grid overhead on 1-TC v5e/v6e).
        batch_block = B // 2 if (B >= 2 and B % 2 == 0) else B
    assert B % batch_block == 0
    num_blocks = B // batch_block

    kernel = functools.partial(_self_attention_kernel,
                               num_heads=num_heads, embed_dim=E)

    out, attw = pl.pallas_call(
        kernel,
        out_shape=(jax.ShapeDtypeStruct((B, L, E), jnp.float32),
                   jax.ShapeDtypeStruct((B, L, L), jnp.float32)),
        grid=(num_blocks,),
        in_specs=[
            pl.BlockSpec((batch_block, L, C), lambda i: (i, 0, 0)),  # x (f32)
            pl.BlockSpec((C, 3 * E), lambda i: (0, 0)),              # fused QKV weight
            pl.BlockSpec((1, 3 * E), lambda i: (0, 0)),              # fused QKV bias
            pl.BlockSpec((E, E), lambda i: (0, 0)),                  # out-proj weight (pre-T)
            pl.BlockSpec((1, E), lambda i: (0, 0)),                  # out-proj bias
        ],
        out_specs=(
            pl.BlockSpec((batch_block, L, E), lambda i: (i, 0, 0)),  # attn_output
            pl.BlockSpec((batch_block, L, L), lambda i: (i, 0, 0)),  # attn_weights
        ),
        compiler_params=pltpu.CompilerParams(
            dimension_semantics=("parallel",),
            vmem_limit_bytes=32 * 1024 * 1024,
        ),
    )(x, w_qkv, b_qkv, w_o, b_o)

    return out, attw


def _init_params(key, in_channels, embed_dim):
    """Deterministic synthetic init mirroring the module's parameter shapes.
    Biases are non-zero so the bias-folding path is actually exercised."""
    ks = jax.random.split(key, 13)

    def xavier(k, fan_out, fan_in):
        bound = math.sqrt(6.0 / (fan_in + fan_out))
        return jax.random.uniform(k, (fan_out, fan_in), jnp.float32, -bound, bound)

    def bias(k, n):
        return 0.1 * jax.random.normal(k, (1, n), jnp.float32)

    E, C = embed_dim, in_channels
    return {
        # w_query / w_key / w_value : Linear(in_channels, embed_dim)
        "wq": xavier(ks[0], E, C), "bq": bias(ks[6], E),
        "wk": xavier(ks[1], E, C), "bk": bias(ks[7], E),
        "wv": xavier(ks[2], E, C), "bv": bias(ks[8], E),
        # MultiheadAttention in_proj (split into q/k/v parts) and out_proj
        "wiq": xavier(ks[3], E, E), "biq": bias(ks[9], E),
        "wik": xavier(ks[4], E, E), "bik": bias(ks[10], E),
        "wiv": xavier(ks[5], E, E), "biv": bias(ks[11], E),
        "wo": xavier(ks[12], E, E), "bo": bias(jax.random.fold_in(key, 99), E),
    }


def _reference_forward(x, params, num_heads):
    """Plain-JAX f32 reference reproducing torch semantics (eval mode, unfused)."""
    q = x @ params["wq"].T + params["bq"][0]
    k = x @ params["wk"].T + params["bk"][0]
    v = x @ params["wv"].T + params["bv"][0]
    q = q @ params["wiq"].T + params["biq"][0]
    k = k @ params["wik"].T + params["bik"][0]
    v = v @ params["wiv"].T + params["biv"][0]
    B, L, E = q.shape
    hd = E // num_heads
    qh = q.reshape(B, L, num_heads, hd).transpose(0, 2, 1, 3)
    kh = k.reshape(B, L, num_heads, hd).transpose(0, 2, 1, 3)
    vh = v.reshape(B, L, num_heads, hd).transpose(0, 2, 1, 3)
    s = jnp.einsum("bhld,bhmd->bhlm", qh, kh) / math.sqrt(hd)
    p = jax.nn.softmax(s, axis=-1)
    ctx = jnp.einsum("bhlm,bhmd->bhld", p, vh).transpose(0, 2, 1, 3).reshape(B, L, E)
    out = ctx @ params["wo"].T + params["bo"][0]
    return out, p.mean(axis=1)


if __name__ == "__main__":
    B, L, C, E, H = 2, 8, 16, 32, 4

    key = jax.random.PRNGKey(0)
    k_x, k_p = jax.random.split(key)
    x = jax.random.normal(k_x, (B, L, C), jnp.float32)
    params = _init_params(k_p, in_channels=C, embed_dim=E)

    out, attn_w = self_attention_forward(x, params, num_heads=H)
    out = jax.block_until_ready(out)
    attn_w = jax.block_until_ready(attn_w)

    ref_out, ref_w = _reference_forward(x, params, H)
    assert out.shape == (B, L, E) and attn_w.shape == (B, L, L)
    # Tolerances relaxed vs a pure-f32 implementation: weight folding + bf16 MXU operands
    # for the QKV / score / context / out-proj matmuls (f32 accumulation throughout).
    assert jnp.allclose(out, ref_out, atol=3e-2, rtol=3e-2), (
        float(jnp.max(jnp.abs(out - ref_out))))
    assert jnp.allclose(attn_w, ref_w, atol=3e-2, rtol=3e-2), (
        float(jnp.max(jnp.abs(attn_w - ref_w))))

    print("KERNEL_OK")
</pallas_src>

<mosaic_0001>
module attributes {stable_mosaic.version = 11 : i64} {
  func.func @_self_attention_kernel(%arg0: i32, %arg1: memref<1x8x16xf32, #tpu.memory_space<vmem>>, %arg2: memref<16x96xbf16, #tpu.memory_space<vmem>>, %arg3: memref<1x96xf32, #tpu.memory_space<vmem>>, %arg4: memref<32x32xbf16, #tpu.memory_space<vmem>>, %arg5: memref<1x32xf32, #tpu.memory_space<vmem>>, %arg6: memref<1x8x32xf32, #tpu.memory_space<vmem>>, %arg7: memref<1x8x8xf32, #tpu.memory_space<vmem>>) attributes {dimension_semantics = [#tpu.dimension_semantics<parallel>], iteration_bounds = array<i64: 2>, scalar_prefetch = 0 : i64, scratch_operands = 0 : i64, tpu.core_type = #tpu.core_type<tc>, window_params = [{transform_indices = @transform_0, window_bounds = array<i64: 1, 8, 16>}, {pipeline_mode = #tpu.pipeline_mode<synchronous>, transform_indices = @transform_1, window_bounds = array<i64: 16, 96>}, {pipeline_mode = #tpu.pipeline_mode<synchronous>, transform_indices = @transform_2, window_bounds = array<i64: 1, 96>}, {pipeline_mode = #tpu.pipeline_mode<synchronous>, transform_indices = @transform_3, window_bounds = array<i64: 32, 32>}, {pipeline_mode = #tpu.pipeline_mode<synchronous>, transform_indices = @transform_4, window_bounds = array<i64: 1, 32>}, {transform_indices = @transform_5, window_bounds = array<i64: 1, 8, 32>}, {transform_indices = @transform_6, window_bounds = array<i64: 1, 8, 8>}]} {
    %c0 = arith.constant 0 : index
    %c0_0 = arith.constant 0 : index
    %c0_1 = arith.constant 0 : index
    %0 = vector.load %arg1[%c0, %c0_0, %c0_1] : memref<1x8x16xf32, #tpu.memory_space<vmem>>, vector<1x8x16xf32>
    %1 = arith.truncf %0 : vector<1x8x16xf32> to vector<1x8x16xbf16>
    %2 = vector.shape_cast %1 : vector<1x8x16xbf16> to vector<8x16xbf16>
    %c0_2 = arith.constant 0 : index
    %c0_3 = arith.constant 0 : index
    %3 = vector.load %arg2[%c0_2, %c0_3] : memref<16x96xbf16, #tpu.memory_space<vmem>>, vector<16x96xbf16>
    %cst = arith.constant dense<0.000000e+00> : vector<8x96xf32>
    %4 = tpu.matmul %2, %3, %cst {dimension_numbers = #tpu.dot_dimension_numbers<[1], [0], [0], [1], [0, 0, 1, 1], [], []>} : vector<8x16xbf16>, vector<16x96xbf16>, vector<8x96xf32> -> vector<8x96xf32>
    %c0_4 = arith.constant 0 : index
    %c0_5 = arith.constant 0 : index
    %5 = vector.load %arg3[%c0_4, %c0_5] : memref<1x96xf32, #tpu.memory_space<vmem>>, vector<1x96xf32>
    %6 = vector.broadcast %5 : vector<1x96xf32> to vector<8x96xf32>
    %7 = arith.addf %4, %6 : vector<8x96xf32>
    %8 = vector.extract_strided_slice %7 {offsets = [0, 0], sizes = [8, 32], strides = [1, 1]} : vector<8x96xf32> to vector<8x32xf32>
    %9 = arith.truncf %8 : vector<8x32xf32> to vector<8x32xbf16>
    %10 = vector.extract_strided_slice %7 {offsets = [0, 32], sizes = [8, 32], strides = [1, 1]} : vector<8x96xf32> to vector<8x32xf32>
    %11 = arith.truncf %10 : vector<8x32xf32> to vector<8x32xbf16>
    %12 = vector.extract_strided_slice %7 {offsets = [0, 64], sizes = [8, 32], strides = [1, 1]} : vector<8x96xf32> to vector<8x32xf32>
    %13 = arith.truncf %12 : vector<8x32xf32> to vector<8x32xbf16>
    %cst_6 = arith.constant 0.000000e+00 : f32
    %14 = vector.broadcast %cst_6 : f32 to vector<8x32xf32>
    %cst_7 = arith.constant 0.000000e+00 : f32
    %15 = vector.broadcast %cst_7 : f32 to vector<8x8xf32>
    %16 = vector.extract_strided_slice %9 {offsets = [0, 0], sizes = [8, 8], strides = [1, 1]} : vector<8x32xbf16> to vector<8x8xbf16>
    %17 = vector.extract_strided_slice %11 {offsets = [0, 0], sizes = [8, 8], strides = [1, 1]} : vector<8x32xbf16> to vector<8x8xbf16>
    %18 = vector.extract_strided_slice %13 {offsets = [0, 0], sizes = [8, 8], strides = [1, 1]} : vector<8x32xbf16> to vector<8x8xbf16>
    %cst_8 = arith.constant dense<0.000000e+00> : vector<8x8xf32>
    %19 = tpu.matmul %16, %17, %cst_8 {dimension_numbers = #tpu.dot_dimension_numbers<[1], [1], [0], [0], [0, 0, 1, 0], [], []>} : vector<8x8xbf16>, vector<8x8xbf16>, vector<8x8xf32> -> vector<8x8xf32>
    %cst_9 = arith.constant dense<0xFF800000> : vector<8xf32>
    %20 = vector.multi_reduction <maximumf>, %19, %cst_9 [1] : vector<8x8xf32> to vector<8xf32>
    %21 = vector.shape_cast %20 : vector<8xf32> to vector<8x1xf32>
    %22 = vector.broadcast %21 : vector<8x1xf32> to vector<8x8xf32>
    %23 = arith.subf %19, %22 : vector<8x8xf32>
    %24 = math.exp %23 : vector<8x8xf32>
    %cst_10 = arith.constant dense<0.000000e+00> : vector<8xf32>
    %25 = vector.multi_reduction <add>, %24, %cst_10 [1] : vector<8x8xf32> to vector<8xf32>
    %26 = vector.shape_cast %25 : vector<8xf32> to vector<8x1xf32>
    %27 = vector.broadcast %26 : vector<8x1xf32> to vector<8x8xf32>
    %28 = arith.divf %24, %27 : vector<8x8xf32>
    %29 = arith.addf %15, %28 : vector<8x8xf32>
    %30 = arith.truncf %28 : vector<8x8xf32> to vector<8x8xbf16>
    %cst_11 = arith.constant dense<0.000000e+00> : vector<8x8xf32>
    %31 = tpu.matmul %30, %18, %cst_11 {dimension_numbers = #tpu.dot_dimension_numbers<[1], [0], [0], [1], [0, 0, 1, 1], [], []>} : vector<8x8xbf16>, vector<8x8xbf16>, vector<8x8xf32> -> vector<8x8xf32>
    %32 = arith.truncf %31 : vector<8x8xf32> to vector<8x8xbf16>
    %c0_12 = arith.constant 0 : index
    %c0_13 = arith.constant 0 : index
    %33 = vector.load %arg4[%c0_12, %c0_13] : memref<32x32xbf16, #tpu.memory_space<vmem>>, vector<8x32xbf16>
    %cst_14 = arith.constant dense<0.000000e+00> : vector<8x32xf32>
    %34 = tpu.matmul %32, %33, %cst_14 {dimension_numbers = #tpu.dot_dimension_numbers<[1], [0], [0], [1], [0, 0, 1, 1], [], []>} : vector<8x8xbf16>, vector<8x32xbf16>, vector<8x32xf32> -> vector<8x32xf32>
    %35 = arith.addf %14, %34 : vector<8x32xf32>
    %36 = vector.extract_strided_slice %9 {offsets = [0, 8], sizes = [8, 8], strides = [1, 1]} : vector<8x32xbf16> to vector<8x8xbf16>
    %37 = vector.extract_strided_slice %11 {offsets = [0, 8], sizes = [8, 8], strides = [1, 1]} : vector<8x32xbf16> to vector<8x8xbf16>
    %38 = vector.extract_strided_slice %13 {offsets = [0, 8], sizes = [8, 8], strides = [1, 1]} : vector<8x32xbf16> to vector<8x8xbf16>
    %cst_15 = arith.constant dense<0.000000e+00> : vector<8x8xf32>
    %39 = tpu.matmul %36, %37, %cst_15 {dimension_numbers = #tpu.dot_dimension_numbers<[1], [1], [0], [0], [0, 0, 1, 0], [], []>} : vector<8x8xbf16>, vector<8x8xbf16>, vector<8x8xf32> -> vector<8x8xf32>
    %cst_16 = arith.constant dense<0xFF800000> : vector<8xf32>
    %40 = vector.multi_reduction <maximumf>, %39, %cst_16 [1] : vector<8x8xf32> to vector<8xf32>
    %41 = vector.shape_cast %40 : vector<8xf32> to vector<8x1xf32>
    %42 = vector.broadcast %41 : vector<8x1xf32> to vector<8x8xf32>
    %43 = arith.subf %39, %42 : vector<8x8xf32>
    %44 = math.exp %43 : vector<8x8xf32>
    %cst_17 = arith.constant dense<0.000000e+00> : vector<8xf32>
    %45 = vector.multi_reduction <add>, %44, %cst_17 [1] : vector<8x8xf32> to vector<8xf32>
    %46 = vector.shape_cast %45 : vector<8xf32> to vector<8x1xf32>
    %47 = vector.broadcast %46 : vector<8x1xf32> to vector<8x8xf32>
    %48 = arith.divf %44, %47 : vector<8x8xf32>
    %49 = arith.addf %29, %48 : vector<8x8xf32>
    %50 = arith.truncf %48 : vector<8x8xf32> to vector<8x8xbf16>
    %cst_18 = arith.constant dense<0.000000e+00> : vector<8x8xf32>
    %51 = tpu.matmul %50, %38, %cst_18 {dimension_numbers = #tpu.dot_dimension_numbers<[1], [0], [0], [1], [0, 0, 1, 1], [], []>} : vector<8x8xbf16>, vector<8x8xbf16>, vector<8x8xf32> -> vector<8x8xf32>
    %52 = arith.truncf %51 : vector<8x8xf32> to vector<8x8xbf16>
    %c8 = arith.constant 8 : index
    %c0_19 = arith.constant 0 : index
    %53 = vector.load %arg4[%c8, %c0_19] : memref<32x32xbf16, #tpu.memory_space<vmem>>, vector<8x32xbf16>
    %cst_20 = arith.constant dense<0.000000e+00> : vector<8x32xf32>
    %54 = tpu.matmul %52, %53, %cst_20 {dimension_numbers = #tpu.dot_dimension_numbers<[1], [0], [0], [1], [0, 0, 1, 1], [], []>} : vector<8x8xbf16>, vector<8x32xbf16>, vector<8x32xf32> -> vector<8x32xf32>
    %55 = arith.addf %35, %54 : vector<8x32xf32>
    %56 = vector.extract_strided_slice %9 {offsets = [0, 16], sizes = [8, 8], strides = [1, 1]} : vector<8x32xbf16> to vector<8x8xbf16>
    %57 = vector.extract_strided_slice %11 {offsets = [0, 16], sizes = [8, 8], strides = [1, 1]} : vector<8x32xbf16> to vector<8x8xbf16>
    %58 = vector.extract_strided_slice %13 {offsets = [0, 16], sizes = [8, 8], strides = [1, 1]} : vector<8x32xbf16> to vector<8x8xbf16>
    %cst_21 = arith.constant dense<0.000000e+00> : vector<8x8xf32>
    %59 = tpu.matmul %56, %57, %cst_21 {dimension_numbers = #tpu.dot_dimension_numbers<[1], [1], [0], [0], [0, 0, 1, 0], [], []>} : vector<8x8xbf16>, vector<8x8xbf16>, vector<8x8xf32> -> vector<8x8xf32>
    %cst_22 = arith.constant dense<0xFF800000> : vector<8xf32>
    %60 = vector.multi_reduction <maximumf>, %59, %cst_22 [1] : vector<8x8xf32> to vector<8xf32>
    %61 = vector.shape_cast %60 : vector<8xf32> to vector<8x1xf32>
    %62 = vector.broadcast %61 : vector<8x1xf32> to vector<8x8xf32>
    %63 = arith.subf %59, %62 : vector<8x8xf32>
    %64 = math.exp %63 : vector<8x8xf32>
    %cst_23 = arith.constant dense<0.000000e+00> : vector<8xf32>
    %65 = vector.multi_reduction <add>, %64, %cst_23 [1] : vector<8x8xf32> to vector<8xf32>
    %66 = vector.shape_cast %65 : vector<8xf32> to vector<8x1xf32>
    %67 = vector.broadcast %66 : vector<8x1xf32> to vector<8x8xf32>
    %68 = arith.divf %64, %67 : vector<8x8xf32>
    %69 = arith.addf %49, %68 : vector<8x8xf32>
    %70 = arith.truncf %68 : vector<8x8xf32> to vector<8x8xbf16>
    %cst_24 = arith.constant dense<0.000000e+00> : vector<8x8xf32>
    %71 = tpu.matmul %70, %58, %cst_24 {dimension_numbers = #tpu.dot_dimension_numbers<[1], [0], [0], [1], [0, 0, 1, 1], [], []>} : vector<8x8xbf16>, vector<8x8xbf16>, vector<8x8xf32> -> vector<8x8xf32>
    %72 = arith.truncf %71 : vector<8x8xf32> to vector<8x8xbf16>
    %c16 = arith.constant 16 : index
    %c0_25 = arith.constant 0 : index
    %73 = vector.load %arg4[%c16, %c0_25] : memref<32x32xbf16, #tpu.memory_space<vmem>>, vector<8x32xbf16>
    %cst_26 = arith.constant dense<0.000000e+00> : vector<8x32xf32>
    %74 = tpu.matmul %72, %73, %cst_26 {dimension_numbers = #tpu.dot_dimension_numbers<[1], [0], [0], [1], [0, 0, 1, 1], [], []>} : vector<8x8xbf16>, vector<8x32xbf16>, vector<8x32xf32> -> vector<8x32xf32>
    %75 = arith.addf %55, %74 : vector<8x32xf32>
    %76 = vector.extract_strided_slice %9 {offsets = [0, 24], sizes = [8, 8], strides = [1, 1]} : vector<8x32xbf16> to vector<8x8xbf16>
    %77 = vector.extract_strided_slice %11 {offsets = [0, 24], sizes = [8, 8], strides = [1, 1]} : vector<8x32xbf16> to vector<8x8xbf16>
    %78 = vector.extract_strided_slice %13 {offsets = [0, 24], sizes = [8, 8], strides = [1, 1]} : vector<8x32xbf16> to vector<8x8xbf16>
    %cst_27 = arith.constant dense<0.000000e+00> : vector<8x8xf32>
    %79 = tpu.matmul %76, %77, %cst_27 {dimension_numbers = #tpu.dot_dimension_numbers<[1], [1], [0], [0], [0, 0, 1, 0], [], []>} : vector<8x8xbf16>, vector<8x8xbf16>, vector<8x8xf32> -> vector<8x8xf32>
    %cst_28 = arith.constant dense<0xFF800000> : vector<8xf32>
    %80 = vector.multi_reduction <maximumf>, %79, %cst_28 [1] : vector<8x8xf32> to vector<8xf32>
    %81 = vector.shape_cast %80 : vector<8xf32> to vector<8x1xf32>
    %82 = vector.broadcast %81 : vector<8x1xf32> to vector<8x8xf32>
    %83 = arith.subf %79, %82 : vector<8x8xf32>
    %84 = math.exp %83 : vector<8x8xf32>
    %cst_29 = arith.constant dense<0.000000e+00> : vector<8xf32>
    %85 = vector.multi_reduction <add>, %84, %cst_29 [1] : vector<8x8xf32> to vector<8xf32>
    %86 = vector.shape_cast %85 : vector<8xf32> to vector<8x1xf32>
    %87 = vector.broadcast %86 : vector<8x1xf32> to vector<8x8xf32>
    %88 = arith.divf %84, %87 : vector<8x8xf32>
    %89 = arith.addf %69, %88 : vector<8x8xf32>
    %90 = arith.truncf %88 : vector<8x8xf32> to vector<8x8xbf16>
    %cst_30 = arith.constant dense<0.000000e+00> : vector<8x8xf32>
    %91 = tpu.matmul %90, %78, %cst_30 {dimension_numbers = #tpu.dot_dimension_numbers<[1], [0], [0], [1], [0, 0, 1, 1], [], []>} : vector<8x8xbf16>, vector<8x8xbf16>, vector<8x8xf32> -> vector<8x8xf32>
    %92 = arith.truncf %91 : vector<8x8xf32> to vector<8x8xbf16>
    %c24 = arith.constant 24 : index
    %c0_31 = arith.constant 0 : index
    %93 = vector.load %arg4[%c24, %c0_31] : memref<32x32xbf16, #tpu.memory_space<vmem>>, vector<8x32xbf16>
    %cst_32 = arith.constant dense<0.000000e+00> : vector<8x32xf32>
    %94 = tpu.matmul %92, %93, %cst_32 {dimension_numbers = #tpu.dot_dimension_numbers<[1], [0], [0], [1], [0, 0, 1, 1], [], []>} : vector<8x8xbf16>, vector<8x32xbf16>, vector<8x32xf32> -> vector<8x32xf32>
    %95 = arith.addf %75, %94 : vector<8x32xf32>
    %c0_33 = arith.constant 0 : index
    %c0_34 = arith.constant 0 : index
    %96 = vector.load %arg5[%c0_33, %c0_34] : memref<1x32xf32, #tpu.memory_space<vmem>>, vector<1x32xf32>
    %97 = vector.broadcast %96 : vector<1x32xf32> to vector<8x32xf32>
    %98 = arith.addf %95, %97 : vector<8x32xf32>
    %c0_35 = arith.constant 0 : index
    %c0_36 = arith.constant 0 : index
    %c0_37 = arith.constant 0 : index
    %99 = vector.load %arg6[%c0_35, %c0_36, %c0_37] : memref<1x8x32xf32, #tpu.memory_space<vmem>>, vector<1x8x32xf32>
    %100 = vector.shape_cast %99 : vector<1x8x32xf32> to vector<8x32xf32>
    %101 = vector.shape_cast %98 : vector<8x32xf32> to vector<1x8x32xf32>
    tpu.vector_store %arg6[%c0_35, %c0_36, %c0_37], %101 {strides = array<i32>} : memref<1x8x32xf32, #tpu.memory_space<vmem>>, vector<1x8x32xf32>,
    %cst_38 = arith.constant 2.500000e-01 : f32
    %102 = vector.broadcast %cst_38 : f32 to vector<8x8xf32>
    %103 = arith.mulf %89, %102 : vector<8x8xf32>
    %c0_39 = arith.constant 0 : index
    %c0_40 = arith.constant 0 : index
    %c0_41 = arith.constant 0 : index
    %104 = vector.load %arg7[%c0_39, %c0_40, %c0_41] : memref<1x8x8xf32, #tpu.memory_space<vmem>>, vector<1x8x8xf32>
    %105 = vector.shape_cast %104 : vector<1x8x8xf32> to vector<8x8xf32>
    %106 = vector.shape_cast %103 : vector<8x8xf32> to vector<1x8x8xf32>
    tpu.vector_store %arg7[%c0_39, %c0_40, %c0_41], %106 {strides = array<i32>} : memref<1x8x8xf32, #tpu.memory_space<vmem>>, vector<1x8x8xf32>,
    return
  }
  func.func @transform_0(%arg0: i32) -> (i32, i32, i32) {
    %c0_i32 = arith.constant 0 : i32
    %c0_i32_0 = arith.constant 0 : i32
    %c0_i32_1 = arith.constant 0 : i32
    return %arg0, %c0_i32, %c0_i32_0 : i32, i32, i32
  }
  func.func @transform_1(%arg0: i32) -> (i32, i32) {
    %c0_i32 = arith.constant 0 : i32
    %c0_i32_0 = arith.constant 0 : i32
    %c0_i32_1 = arith.constant 0 : i32
    return %c0_i32, %c0_i32_0 : i32, i32
  }
  func.func @transform_2(%arg0: i32) -> (i32, i32) {
    %c0_i32 = arith.constant 0 : i32
    %c0_i32_0 = arith.constant 0 : i32
    %c0_i32_1 = arith.constant 0 : i32
    return %c0_i32, %c0_i32_0 : i32, i32
  }
  func.func @transform_3(%arg0: i32) -> (i32, i32) {
    %c0_i32 = arith.constant 0 : i32
    %c0_i32_0 = arith.constant 0 : i32
    %c0_i32_1 = arith.constant 0 : i32
    return %c0_i32, %c0_i32_0 : i32, i32
  }
  func.func @transform_4(%arg0: i32) -> (i32, i32) {
    %c0_i32 = arith.constant 0 : i32
    %c0_i32_0 = arith.constant 0 : i32
    %c0_i32_1 = arith.constant 0 : i32
    return %c0_i32, %c0_i32_0 : i32, i32
  }
  func.func @transform_5(%arg0: i32) -> (i32, i32, i32) {
    %c0_i32 = arith.constant 0 : i32
    %c0_i32_0 = arith.constant 0 : i32
    %c0_i32_1 = arith.constant 0 : i32
    return %arg0, %c0_i32, %c0_i32_0 : i32, i32, i32
  }
  func.func @transform_6(%arg0: i32) -> (i32, i32, i32) {
    %c0_i32 = arith.constant 0 : i32
    %c0_i32_0 = arith.constant 0 : i32
    %c0_i32_1 = arith.constant 0 : i32
    return %arg0, %c0_i32, %c0_i32_0 : i32, i32, i32
  }
}

</mosaic_0001>

<llo_original>
// kernel: tpu_custom_call.1
$region0: #{tpu_custom_call.1}
  #allocation0 [shape = 'u32[]', space=smem, size = 0x4, offset = 0x4, fixed_abs, tag = 'smem constant byte address 0x4 - core index']
  #allocation1 [shape = 'u32[72,128]{1,0:T(1,128)}', space=vmem, size = 0x9000, scoped, tag = 'internal scratch']
  %s0 = inlined_call_operand.hbm [shape: f32[2,8,16], index: 0, kind: input, shape index: {}]
  %s1 = inlined_call_operand.hbm [shape: bf16[16,96], index: 1, kind: input, shape index: {}]
  %s2 = inlined_call_operand.vmem [shape: f32[1,96], index: 2, kind: input, shape index: {}]
  %s3 = inlined_call_operand.hbm [shape: bf16[32,32], index: 3, kind: input, shape index: {}]
  %s4 = inlined_call_operand.vmem [shape: f32[1,32], index: 4, kind: input, shape index: {}]
  %s5 = inlined_call_operand.hbm [shape: f32[2,8,32], index: 5, kind: output, shape index: {0}]
  %s6 = inlined_call_operand.hbm [shape: f32[2,8,8], index: 6, kind: output, shape index: {1}]
  %7 = xla_tuple %s5, %s6
  %s8 = sld [smem:[#allocation0]]
  $region73: #{tpu_custom_call.1} parent=0
    _
  %s10 = ssub.s32 1, %s8
  %s11 = scalar_select 0, %s10, %s8
  $region1: #{tpu_custom_call.1} parent=0
    #allocation2 [shape = 'u8[8192]{0}', space=vmem, size = 0x2000, scoped, tag = 'input window, operand 0']
    #allocation3 [shape = 's32[2]{0}', space=sflag, size = 0x8, scoped, tag = 'scoped memory for tpu_custom_call.1']
    #allocation4 [shape = 's32[2]{0}', space=sflag, size = 0x8, scoped, tag = 'scoped memory for tpu_custom_call.1']
    #allocation5 [shape = 'u8[4096]{0}', space=vmem, size = 0x1000, scoped, tag = 'input window, operand 1, single buffered']
    #allocation6 [shape = 's32[1]{0}', space=sflag, size = 0x4, scoped, tag = 'scoped memory for tpu_custom_call.1']
    #allocation7 [shape = 'u8[8192]{0}', space=vmem, size = 0x2000, scoped, tag = 'input window, operand 3, single buffered']
    #allocation8 [shape = 'u8[8192]{0}', space=vmem, size = 0x2000, scoped, tag = 'output window, operand 0']
    #allocation9 [shape = 'u8[8192]{0}', space=vmem, size = 0x2000, scoped, tag = 'output window, operand 1']
    #allocation10 [shape = 's32[2]{0}', space=sflag, size = 0x8, scoped, tag = 'scoped memory for tpu_custom_call.1']
    %12 = vsyncpa [#allocation3], 0
    %s13 = scalar_lea.sflag [#allocation3], 1
    %14 = vsyncpa %s13, 0
    %15 = vsyncpa [#allocation6], 0
    %16 = vsyncpa [#allocation4], 0
    %s17 = scalar_lea.sflag [#allocation4], 1
    %18 = vsyncpa %s17, 0
    %19 = vsyncpa [#allocation10], 0
    %s20 = scalar_lea.sflag [#allocation10], 1
    %21 = vsyncpa %s20, 0
    loop: start=0, step=1, limit=4
    $region2: #{tpu_custom_call.1} parent=1 // loop_pre_header
      _
    $region3: #{tpu_custom_call.1} parent=1 // loop_header
      %s23 = sphi 0, %s27
      %p24 = scmp.ge.s32.totalorder %s23, 4
      %s33 = sphi 0, %s35
      %s36 = sphi 0, %s33
      %s37 = sphi 0, %s36
      %s53 = sphi 0, %s37
      %s57 = sphi 0, %s57
      %s59 = sphi 0, %s57
      %s60 = sphi 0, %s59
      %s74 = sphi 0, %s60
      %s78 = sphi 0, %s78
      %s80 = sphi 0, %s78
      %s81 = sphi 0, %s80
      %s95 = sphi 0, %s81
      %s99 = sphi 0, %s99
      %s101 = sphi 0, %s99
      %s102 = sphi 0, %s101
      %s116 = sphi 0, %s102
      %s120 = sphi 0, %s120
      %s122 = sphi 0, %s120
      %s123 = sphi 0, %s122
      %s137 = sphi 0, %s123
      %s143 = sphi 0, %s145
      %s146 = sphi 0, %s143
      %s147 = sphi 0, %s146
      %s163 = sphi 0, %s147
      %s169 = sphi 0, %s171
      %s172 = sphi 0, %s169
      %s173 = sphi 0, %s172
      %s189 = sphi 0, %s173
    $region4: #{tpu_custom_call.1} parent=1 // loop_header_branch
      %26 = sbr.rel (%p24) target = $region8
    $region5: #{tpu_custom_call.1} parent=1 // loop_body
      %s28 = ssub.s32 %s23, 1
      %s29 = ssub.s32 %s23, 2
      %s30 = sadd.s32 %s23, 1
      %s31 = ssub.s32 %s23, %s30
      %p32 = scmp.eq.s32.totalorder %s31, 0
      %s34 = sadd.s32 %s33, 1
      %s35 = scalar_select %p32, %s33, %s34
      %p38 = pneg %p32
      %p39 = scmp.eq.s32.totalorder %s23, 1
      %p40 = por %p38, %p39
      %p41 = scmp.ne.s32.totalorder %s33, %s36
      %p42 = scmp.eq.s32.totalorder %s23, 0
      %p43 = por %p41, %p42
      %p44 = scmp.ne.s32.totalorder %s33, %s36
      %p45 = scmp.eq.s32.totalorder %s28, 1
      %p46 = por %p44, %p45
      %p47 = scmp.ne.s32.totalorder %s36, %s37
      %p48 = scmp.eq.s32.totalorder %s28, 0
      %p49 = por %p47, %p48
      %p50 = scmp.ne.s32.totalorder %s36, %s37
      %p51 = scmp.eq.s32.totalorder %s29, 1
      %p52 = por %p50, %p51
      %p54 = scmp.ne.s32.totalorder %s37, %s53
      %p55 = scmp.eq.s32.totalorder %s29, 0
      %p56 = por %p54, %p55
      %s58 = sadd.s32 %s57, 1
      %p61 = scmp.eq.s32.totalorder %s23, 1
      %p62 = scmp.ne.s32.totalorder %s57, %s59
      %p63 = scmp.eq.s32.totalorder %s23, 0
      %p64 = por %p62, %p63
      %p65 = scmp.ne.s32.totalorder %s57, %s59
      %p66 = scmp.eq.s32.totalorder %s28, 1
      %p67 = por %p65, %p66
      %p68 = scmp.ne.s32.totalorder %s59, %s60
      %p69 = scmp.eq.s32.totalorder %s28, 0
      %p70 = por %p68, %p69
      %p71 = scmp.ne.s32.totalorder %s59, %s60
      %p72 = scmp.eq.s32.totalorder %s29, 1
      %p73 = por %p71, %p72
      %p75 = scmp.ne.s32.totalorder %s60, %s74
      %p76 = scmp.eq.s32.totalorder %s29, 0
      %p77 = por %p75, %p76
      %s79 = sadd.s32 %s78, 1
      %p82 = scmp.eq.s32.totalorder %s23, 1
      %p83 = scmp.ne.s32.totalorder %s78, %s80
      %p84 = scmp.eq.s32.totalorder %s23, 0
      %p85 = por %p83, %p84
      %p86 = scmp.ne.s32.totalorder %s78, %s80
      %p87 = scmp.eq.s32.totalorder %s28, 1
      %p88 = por %p86, %p87
      %p89 = scmp.ne.s32.totalorder %s80, %s81
      %p90 = scmp.eq.s32.totalorder %s28, 0
      %p91 = por %p89, %p90
      %p92 = scmp.ne.s32.totalorder %s80, %s81
      %p93 = scmp.eq.s32.totalorder %s29, 1
      %p94 = por %p92, %p93
      %p96 = scmp.ne.s32.totalorder %s81, %s95
      %p97 = scmp.eq.s32.totalorder %s29, 0
      %p98 = por %p96, %p97
      %s100 = sadd.s32 %s99, 1
      %p103 = scmp.eq.s32.totalorder %s23, 1
      %p104 = scmp.ne.s32.totalorder %s99, %s101
      %p105 = scmp.eq.s32.totalorder %s23, 0
      %p106 = por %p104, %p105
      %p107 = scmp.ne.s32.totalorder %s99, %s101
      %p108 = scmp.eq.s32.totalorder %s28, 1
      %p109 = por %p107, %p108
      %p110 = scmp.ne.s32.totalorder %s101, %s102
      %p111 = scmp.eq.s32.totalorder %s28, 0
      %p112 = por %p110, %p111
      %p113 = scmp.ne.s32.totalorder %s101, %s102
      %p114 = scmp.eq.s32.totalorder %s29, 1
      %p115 = por %p113, %p114
      %p117 = scmp.ne.s32.totalorder %s102, %s116
      %p118 = scmp.eq.s32.totalorder %s29, 0
      %p119 = por %p117, %p118
      %s121 = sadd.s32 %s120, 1
      %p124 = scmp.eq.s32.totalorder %s23, 1
      %p125 = scmp.ne.s32.totalorder %s120, %s122
      %p126 = scmp.eq.s32.totalorder %s23, 0
      %p127 = por %p125, %p126
      %p128 = scmp.ne.s32.totalorder %s120, %s122
      %p129 = scmp.eq.s32.totalorder %s28, 1
      %p130 = por %p128, %p129
      %p131 = scmp.ne.s32.totalorder %s122, %s123
      %p132 = scmp.eq.s32.totalorder %s28, 0
      %p133 = por %p131, %p132
      %p134 = scmp.ne.s32.totalorder %s122, %s123
      %p135 = scmp.eq.s32.totalorder %s29, 1
      %p136 = por %p134, %p135
      %p138 = scmp.ne.s32.totalorder %s123, %s137
      %p139 = scmp.eq.s32.totalorder %s29, 0
      %p140 = por %p138, %p139
      %s141 = ssub.s32 %s23, %s30
      %p142 = scmp.eq.s32.totalorder %s141, 0
      %s144 = sadd.s32 %s143, 1
      %s145 = scalar_select %p142, %s143, %s144
      %p148 = pneg %p142
      %p149 = scmp.eq.s32.totalorder %s23, 1
      %p150 = por %p148, %p149
      %p151 = scmp.ne.s32.totalorder %s143, %s146
      %p152 = scmp.eq.s32.totalorder %s23, 0
      %p153 = por %p151, %p152
      %p154 = scmp.ne.s32.totalorder %s143, %s146
      %p155 = scmp.eq.s32.totalorder %s28, 1
      %p156 = por %p154, %p155
      %p157 = scmp.ne.s32.totalorder %s146, %s147
      %p158 = scmp.eq.s32.totalorder %s28, 0
      %p159 = por %p157, %p158
      %p160 = scmp.ne.s32.totalorder %s146, %s147
      %p161 = scmp.eq.s32.totalorder %s29, 1
      %p162 = por %p160, %p161
      %p164 = scmp.ne.s32.totalorder %s147, %s163
      %p165 = scmp.eq.s32.totalorder %s29, 0
      %p166 = por %p164, %p165
      %s167 = ssub.s32 %s23, %s30
      %p168 = scmp.eq.s32.totalorder %s167, 0
      %s170 = sadd.s32 %s169, 1
      %s171 = scalar_select %p168, %s169, %s170
      %p174 = pneg %p168
      %p175 = scmp.eq.s32.totalorder %s23, 1
      %p176 = por %p174, %p175
      %p177 = scmp.ne.s32.totalorder %s169, %s172
      %p178 = scmp.eq.s32.totalorder %s23, 0
      %p179 = por %p177, %p178
      %p180 = scmp.ne.s32.totalorder %s169, %s172
      %p181 = scmp.eq.s32.totalorder %s28, 1
      %p182 = por %p180, %p181
      %p183 = scmp.ne.s32.totalorder %s172, %s173
      %p184 = scmp.eq.s32.totalorder %s28, 0
      %p185 = por %p183, %p184
      %p186 = scmp.ne.s32.totalorder %s172, %s173
      %p187 = scmp.eq.s32.totalorder %s29, 1
      %p188 = por %p186, %p187
      %p190 = scmp.ne.s32.totalorder %s173, %s189
      %p191 = scmp.eq.s32.totalorder %s29, 0
      %p192 = por %p190, %p191
      %p193 = scmp.le.s32.totalorder 1, %s23
      %p194 = scmp.lt.s32.totalorder %s23, 3
      %p195 = pnand %p193, %p194
      %p196 = pneg %p195
      // Predicated region
      $region9: #{tpu_custom_call.1} parent=5 // pred_check
        _
      $region10: #{tpu_custom_call.1} parent=5 // pred_check_branch
        %198 = sbr.rel (%p195) target = $region12
      $region11: #{tpu_custom_call.1} parent=5 // pred_region
        %s199 = ssub.s32 %s23, 1
        // Predicated region
        $region13: #{tpu_custom_call.1} parent=11 // pred_check
          %p200 = pneg %p70
        $region14: #{tpu_custom_call.1} parent=11 // pred_check_branch
          %202 = sbr.rel (%p200) target = $region16
        $region15: #{tpu_custom_call.1} parent=11 // pred_region
          %204 = vsyncadd [#allocation6], 0
          %s205 = sshll.u32 %s1, 4
          %s206 = int_to_ptr.hbm [resolvable:$true] %s205
          %s207 = sshll.u32 [#allocation5], 4
          %s208 = int_to_ptr.vmem [resolvable:$true] %s207
          %213 = dma.hbm_to_vmem [thread:$0]  %s206, 128, %s208, [#allocation6], 64, 64, 4
        $region16: #{tpu_custom_call.1} parent=11 // pred_fallthru
          _
        // Predicated region
        $region17: #{tpu_custom_call.1} parent=11 // pred_check
          %p214 = pneg %p91
        $region18: #{tpu_custom_call.1} parent=11 // pred_check_branch
          %216 = sbr.rel (%p214) target = $region20
        $region19: #{tpu_custom_call.1} parent=11 // pred_region
          _
        $region20: #{tpu_custom_call.1} parent=11 // pred_fallthru
          _
        // Predicated region
        $region21: #{tpu_custom_call.1} parent=11 // pred_check
          %p217 = pneg %p112
        $region22: #{tpu_custom_call.1} parent=11 // pred_check_branch
          %219 = sbr.rel (%p217) target = $region24
        $region23: #{tpu_custom_call.1} parent=11 // pred_region
          %221 = vsyncadd [#allocation6], 0
          %s222 = sshll.u32 %s3, 4
          %s223 = int_to_ptr.hbm [resolvable:$true] %s222
          %s224 = sshll.u32 [#allocation7], 4
          %s225 = int_to_ptr.vmem [resolvable:$true] %s224
          %230 = dma.hbm_to_vmem [thread:$0]  %s223, 256, %s225, [#allocation6], 64, 64, 4
        $region24: #{tpu_custom_call.1} parent=11 // pred_fallthru
          _
        // Predicated region
        $region25: #{tpu_custom_call.1} parent=11 // pred_check
          %p231 = pneg %p133
        $region26: #{tpu_custom_call.1} parent=11 // pred_check_branch
          %233 = sbr.rel (%p231) target = $region28
        $region27: #{tpu_custom_call.1} parent=11 // pred_region
          _
        $region28: #{tpu_custom_call.1} parent=11 // pred_fallthru
          _
      $region12: #{tpu_custom_call.1} parent=5 // pred_fallthru
        _
      %p234 = scmp.lt.s32.totalorder %s23, 2
      // Predicated region
      $region29: #{tpu_custom_call.1} parent=5 // pred_check
        %p235 = pneg %p234
      $region30: #{tpu_custom_call.1} parent=5 // pred_check_branch
        %237 = sbr.rel (%p235) target = $region32
      $region31: #{tpu_custom_call.1} parent=5 // pred_region
        // Predicated region
        $region33: #{tpu_custom_call.1} parent=31 // pred_check
          %p238 = pneg %p43
        $region34: #{tpu_custom_call.1} parent=31 // pred_check_branch
          %240 = sbr.rel (%p238) target = $region36
        $region35: #{tpu_custom_call.1} parent=31 // pred_region
          %s241 = sand.u32 %s33, 1
          %s242 = scalar_lea.sflag [#allocation3], %s241
          %s243 = sand.u32 %s33, 1
          %s244 = smul.addr %s243, 8
          %s245 = scalar_lea.vmem [#allocation2], %s244
          %247 = vsyncadd %s242, 0
          %s248 = smul.addr %s23, 8
          %s249 = scalar_lea.hbm %s0, %s248
          %s251 = sshll.u32 %s249, 4
          %s252 = int_to_ptr.hbm [resolvable:$true] %s251
          %s253 = sshll.u32 %s245, 4
          %s254 = int_to_ptr.vmem [resolvable:$true] %s253
          %256 = dma.hbm_to_vmem [thread:$0]  %s252, 128, %s254, %s242
        $region36: #{tpu_custom_call.1} parent=31 // pred_fallthru
          _
      $region32: #{tpu_custom_call.1} parent=5 // pred_fallthru
        _
      %p257 = scmp.le.s32.totalorder 1, %s23
      %p258 = scmp.lt.s32.totalorder %s23, 3
      %p259 = pnand %p257, %p258
      %p260 = pneg %p259
      // Predicated region
      $region37: #{tpu_custom_call.1} parent=5 // pred_check
        _
      $region38: #{tpu_custom_call.1} parent=5 // pred_check_branch
        %262 = sbr.rel (%p259) target = $region40
      $region39: #{tpu_custom_call.1} parent=5 // pred_region
        %s263 = ssub.s32 %s23, 1
        %s264 = sand.u32 %s36, 1
        %s265 = scalar_lea.sflag [#allocation3], %s264
        %s266 = sand.u32 %s36, 1
        %s267 = smul.addr %s266, 8
        %s268 = scalar_lea.vmem [#allocation2], %s267
        // Predicated region
        $region41: #{tpu_custom_call.1} parent=39 // pred_check
          %p269 = pneg %p49
        $region42: #{tpu_custom_call.1} parent=39 // pred_check_branch
          %271 = sbr.rel (%p269) target = $region44
        $region43: #{tpu_custom_call.1} parent=39 // pred_region
          %273 = dma.done %s265, 128
        $region44: #{tpu_custom_call.1} parent=39 // pred_fallthru
          _
        // Predicated region
        $region45: #{tpu_custom_call.1} parent=39 // pred_check
          %p274 = pneg %p70
        $region46: #{tpu_custom_call.1} parent=39 // pred_check_branch
          %276 = sbr.rel (%p274) target = $region48
        $region47: #{tpu_custom_call.1} parent=39 // pred_region
          %278 = dma.done [#allocation6], 128
        $region48: #{tpu_custom_call.1} parent=39 // pred_fallthru
          _
        // Predicated region
        $region49: #{tpu_custom_call.1} parent=39 // pred_check
          %p279 = pneg %p112
        $region50: #{tpu_custom_call.1} parent=39 // pred_check_branch
          %281 = sbr.rel (%p279) target = $region52
        $region51: #{tpu_custom_call.1} parent=39 // pred_region
          %283 = dma.done [#allocation6], 256
        $region52: #{tpu_custom_call.1} parent=39 // pred_fallthru
          _
        %s284 = sand.u32 %s36, 1
        %s285 = scalar_lea.sflag [#allocation3], %s284
        %s286 = sand.u32 %s36, 1
        %s287 = smul.addr %s286, 8
        %s288 = scalar_lea.vmem [#allocation2], %s287
        %p289 = pneg %p49
        %p290 = pneg %p46
        %p291 = pneg %p70
        %p292 = pneg %p67
        %p293 = pneg %p91
        %p294 = pneg %p88
        %p295 = pneg %p112
        %p296 = pneg %p109
        %p297 = pneg %p133
        %p298 = pneg %p130
        %p299 = pneg %p159
        %p300 = pneg %p156
        %s301 = sand.u32 %s146, 1
        %s302 = scalar_lea.sflag [#allocation4], %s301
        %s303 = sand.u32 %s146, 1
        %s304 = smul.addr %s303, 8
        %s305 = scalar_lea.vmem [#allocation8], %s304
        %p306 = pneg %p185
        %p307 = pneg %p182
        %s308 = sand.u32 %s172, 1
        %s309 = scalar_lea.sflag [#allocation10], %s308
        %s310 = sand.u32 %s172, 1
        %s311 = smul.addr %s310, 8
        %s312 = scalar_lea.vmem [#allocation9], %s311
        %v314 = vld [vmem:[%s268] sm:$0xff]
        %v315 = vpack.c.bf16 %v314, %v314
        %v316 = vld [vmem:[#allocation5] sm:$0xf]
        %v317 = vld [vmem:[#allocation5 + $0x4] sm:$0xf]
        %v318 = vld [vmem:[%s2] sm:$0x1]
        %v320 = vperm.slane %v318, 0
        %v324 = vunpack.c.l.b16 %v316
        %v325 = vunpack.c.l.b16 %v317
        %v326 = vpack.c.b16 %v325, %v324
        %vm328 = vcmask 130048
        %v330 = vsel %vm328, %v315, 0
        %332 = vmatpush.bf16.msra.mxu0 0
        %333 = vmatpush.bf16.msra.mxu0 0
        %334 = vmatpush.bf16.msra.mxu0 0
        %335 = vmatpush.bf16.msra.mxu0 0
        %336 = vmatpush.bf16.msra.mxu0 0
        %337 = vmatpush.bf16.msra.mxu0 0
        %338 = vmatpush.bf16.msra.mxu0 0
        %339 = vmatpush.bf16.msra.mxu0 %v326
        %340 = vmatmul.bf16.gmra.mxu0 %v330
        %v341 = vpop.f32.mrf.mxu0
        %v342 = vadd.f32 %v320, %v341
        %v343 = vpop.f32.mrf.mxu0
        %344 = vdwg.mxu0
        %v345 = vpack.c.bf16 %v342, %v342
        %v347 = vunpack.c.l.b16 %v345
        %v348 = vpack.c.b16 %v347, %v347
        %349 = vrot.lane.b32.xlu0 %v348, 96
        %v350 = vpop.permute.xlu0 %349
        %vm351 = vcmask 64512
        %v353 = vsel %vm351, %v345, 0
        %v356 = vsel %vm351, %v350, 0
        %358 = vmatpush.bf16.xpose.msra.mxu0 0
        %359 = vmatpush.bf16.xpose.msra.mxu0 0
        %360 = vmatpush.bf16.xpose.msra.mxu0 0
        %361 = vmatpush.bf16.xpose.msra.mxu0 0
        %362 = vmatpush.bf16.xpose.msra.mxu0 0
        %363 = vmatpush.bf16.xpose.msra.mxu0 0
        %364 = vmatpush.bf16.xpose.msra.mxu0 0
        %365 = vmatpush.bf16.xpose.msra.mxu0 %v356
        %366 = vmatmul.bf16.gmra.mxu0 %v353
        %v367 = vpop.f32.mrf.mxu0
        %v368 = vadd.f32 0.0, %v367
        %v369 = vpop.f32.mrf.mxu0
        %370 = vdwg.mxu0
        %v371 = vsel %vm351, %v368, -inf
        %372 = vmax.xlane.f32.xlu0 %v371
        %v373 = vpop.xlane.xlu0 %372
        %v374 = vsub.f32 %v368, %v373
        %v375 = vmul.f32 %v374, 1.442695
        %v376 = vpow.pop %v375
        %v377 = vsel %vm351, %v376, 0.0
        %378 = vadd.xlane.f32.xlu0 %v377
        %v379 = vpop.xlane.xlu0 %378
        %v380 = vrcp.pop %v379
        %v381 = vmul.f32 %v379, %v380
        %v382 = vsub.f32 1.0, %v381
        %v383 = vmul.f32 %v380, %v382
        %v384 = vadd.f32 %v380, %v383
        %vm385 = vweird.f32 %v379
        %vm386 = vweird.f32 %v380
        %vm387 = vmor %vm385, %vm386
        %v388 = vsel %vm387, %v380, %v384
        %v389 = vand.u32 2147483647, %v379
        %vm390 = vcmp.eq.f32.partialorder %v389, 8.507059e+37
        %v391 = vand.u32 %v379, 2147483648
        %v392 = vor.u32 1.1754944e-38, %v391
        %v393 = vsel %vm390, %v392, %v388
        %v394 = vmul.f32 %v376, %v393
        %v395 = vadd.f32 %v394, 0.0
        %v396 = vpack.c.bf16 %v394, %v394
        %397 = vrot.lane.b32.xlu0 %v348, 64
        %v398 = vpop.permute.xlu0 %397
        %v400 = vsel %vm351, %v396, 0
        %vm402 = vcmask 1043456
        %v404 = vsel %vm402, %v398, 0
        %406 = vmatpush.bf16.msra.mxu0 0
        %407 = vmatpush.bf16.msra.mxu0 0
        %408 = vmatpush.bf16.msra.mxu0 0
        %409 = vmatpush.bf16.msra.mxu0 0
        %410 = vmatpush.bf16.msra.mxu0 0
        %411 = vmatpush.bf16.msra.mxu0 0
        %412 = vmatpush.bf16.msra.mxu0 0
        %413 = vmatpush.bf16.msra.mxu0 %v404
        %414 = vmatmul.bf16.gmra.mxu0 %v400
        %v415 = vpop.f32.mrf.mxu0
        %v416 = vadd.f32 0.0, %v415
        %v417 = vpop.f32.mrf.mxu0
        %418 = vdwg.mxu0
        %v419 = vpack.c.bf16 %v416, %v416
        %v420 = vld [vmem:[#allocation7] sm:$0xf]
        %421 = vrot.lane.b32.xlu0 %v348, 120
        %v422 = vpop.permute.xlu0 %421
        %423 = vrot.lane.b32.xlu0 %v348, 88
        %v424 = vpop.permute.xlu0 %423
        %v426 = vsel %vm351, %v422, 0
        %v429 = vsel %vm351, %v424, 0
        %431 = vmatpush.bf16.xpose.msra.mxu0 0
        %432 = vmatpush.bf16.xpose.msra.mxu0 0
        %433 = vmatpush.bf16.xpose.msra.mxu0 0
        %434 = vmatpush.bf16.xpose.msra.mxu0 0
        %435 = vmatpush.bf16.xpose.msra.mxu0 0
        %436 = vmatpush.bf16.xpose.msra.mxu0 0
        %437 = vmatpush.bf16.xpose.msra.mxu0 0
        %438 = vmatpush.bf16.xpose.msra.mxu0 %v429
        %439 = vmatmul.bf16.gmra.mxu0 %v426
        %v440 = vpop.f32.mrf.mxu0
        %v441 = vadd.f32 0.0, %v440
        %v442 = vpop.f32.mrf.mxu0
        %443 = vdwg.mxu0
        %v444 = vsel %vm351, %v441, -inf
        %445 = vmax.xlane.f32.xlu0 %v444
        %v446 = vpop.xlane.xlu0 %445
        %v447 = vsub.f32 %v441, %v446
        %v448 = vmul.f32 %v447, 1.442695
        %v449 = vpow.pop %v448
        %v450 = vsel %vm351, %v449, 0.0
        %451 = vadd.xlane.f32.xlu0 %v450
        %v452 = vpop.xlane.xlu0 %451
        %v453 = vrcp.pop %v452
        %v454 = vmul.f32 %v452, %v453
        %v455 = vsub.f32 1.0, %v454
        %v456 = vmul.f32 %v453, %v455
        %v457 = vadd.f32 %v453, %v456
        %vm458 = vweird.f32 %v452
        %vm459 = vweird.f32 %v453
        %vm460 = vmor %vm458, %vm459
        %v461 = vsel %vm460, %v453, %v457
        %v462 = vand.u32 2147483647, %v452
        %vm463 = vcmp.eq.f32.partialorder %v462, 8.507059e+37
        %v464 = vand.u32 %v452, 2147483648
        %v465 = vor.u32 1.1754944e-38, %v464
        %v466 = vsel %vm463, %v465, %v461
        %v467 = vmul.f32 %v449, %v466
        %v468 = vadd.f32 %v395, %v467
        %v469 = vpack.c.bf16 %v467, %v467
        %470 = vrot.lane.b32.xlu0 %v348, 56
        %v471 = vpop.permute.xlu0 %470
        %v473 = vsel %vm351, %v469, 0
        %v476 = vsel %vm402, %v471, 0
        %478 = vmatpush.bf16.msra.mxu0 0
        %479 = vmatpush.bf16.msra.mxu0 0
        %480 = vmatpush.bf16.msra.mxu0 0
        %481 = vmatpush.bf16.msra.mxu0 0
        %482 = vmatpush.bf16.msra.mxu0 0
        %483 = vmatpush.bf16.msra.mxu0 0
        %484 = vmatpush.bf16.msra.mxu0 0
        %485 = vmatpush.bf16.msra.mxu0 %v476
        %486 = vmatmul.bf16.gmra.mxu0 %v473
        %v487 = vpop.f32.mrf.mxu0
        %v488 = vadd.f32 0.0, %v487
        %v489 = vpop.f32.mrf.mxu0
        %490 = vdwg.mxu0
        %v491 = vpack.c.bf16 %v488, %v488
        %v492 = vld [vmem:[#allocation7 + $0x4] sm:$0xf]
        %v494 = vsel %vm351, %v491, 0
        %v497 = vsel %vm402, %v492, 0
        %499 = vmatpush.bf16.msra.mxu0 0
        %500 = vmatpush.bf16.msra.mxu0 0
        %501 = vmatpush.bf16.msra.mxu0 0
        %502 = vmatpush.bf16.msra.mxu0 0
        %503 = vmatpush.bf16.msra.mxu0 0
        %504 = vmatpush.bf16.msra.mxu0 0
        %505 = vmatpush.bf16.msra.mxu0 0
        %506 = vmatpush.bf16.msra.mxu0 %v497
        %507 = vmatmul.bf16.gmra.mxu0 %v494
        %v508 = vpop.f32.mrf.mxu0
        %v509 = vadd.f32 0.0, %v508
        %v510 = vpop.f32.mrf.mxu0
        %511 = vdwg.mxu0
        %v513 = vsel %vm351, %v419, 0
        %v516 = vsel %vm402, %v420, 0
        %518 = vmatpush.bf16.msra.mxu0 0
        %519 = vmatpush.bf16.msra.mxu0 0
        %520 = vmatpush.bf16.msra.mxu0 0
        %521 = vmatpush.bf16.msra.mxu0 0
        %522 = vmatpush.bf16.msra.mxu0 0
        %523 = vmatpush.bf16.msra.mxu0 0
        %524 = vmatpush.bf16.msra.mxu0 0
        %525 = vmatpush.bf16.msra.mxu0 %v516
        %526 = vmatmul.bf16.gmra.mxu0 %v513
        %v527 = vpop.f32.mrf.mxu0
        %v528 = vadd.f32 %v509, %v527
        %v529 = vpop.f32.mrf.mxu0
        %530 = vdwg.mxu0
        %531 = vrot.lane.b32.xlu0 %v348, 112
        %v532 = vpop.permute.xlu0 %531
        %533 = vrot.lane.b32.xlu0 %v348, 80
        %v534 = vpop.permute.xlu0 %533
        %v536 = vsel %vm351, %v532, 0
        %v539 = vsel %vm351, %v534, 0
        %541 = vmatpush.bf16.xpose.msra.mxu0 0
        %542 = vmatpush.bf16.xpose.msra.mxu0 0
        %543 = vmatpush.bf16.xpose.msra.mxu0 0
        %544 = vmatpush.bf16.xpose.msra.mxu0 0
        %545 = vmatpush.bf16.xpose.msra.mxu0 0
        %546 = vmatpush.bf16.xpose.msra.mxu0 0
        %547 = vmatpush.bf16.xpose.msra.mxu0 0
        %548 = vmatpush.bf16.xpose.msra.mxu0 %v539
        %549 = vmatmul.bf16.gmra.mxu0 %v536
        %v550 = vpop.f32.mrf.mxu0
        %v551 = vadd.f32 0.0, %v550
        %v552 = vpop.f32.mrf.mxu0
        %553 = vdwg.mxu0
        %v554 = vsel %vm351, %v551, -inf
        %555 = vmax.xlane.f32.xlu0 %v554
        %v556 = vpop.xlane.xlu0 %555
        %v557 = vsub.f32 %v551, %v556
        %v558 = vmul.f32 %v557, 1.442695
        %v559 = vpow.pop %v558
        %v560 = vsel %vm351, %v559, 0.0
        %561 = vadd.xlane.f32.xlu0 %v560
        %v562 = vpop.xlane.xlu0 %561
        %v563 = vrcp.pop %v562
        %v564 = vmul.f32 %v562, %v563
        %v565 = vsub.f32 1.0, %v564
        %v566 = vmul.f32 %v563, %v565
        %v567 = vadd.f32 %v563, %v566
        %vm568 = vweird.f32 %v562
        %vm569 = vweird.f32 %v563
        %vm570 = vmor %vm568, %vm569
        %v571 = vsel %vm570, %v563, %v567
        %v572 = vand.u32 2147483647, %v562
        %vm573 = vcmp.eq.f32.partialorder %v572, 8.507059e+37
        %v574 = vand.u32 %v562, 2147483648
        %v575 = vor.u32 1.1754944e-38, %v574
        %v576 = vsel %vm573, %v575, %v571
        %v577 = vmul.f32 %v559, %v576
        %v578 = vadd.f32 %v468, %v577
        %v579 = vpack.c.bf16 %v577, %v577
        %580 = vrot.lane.b32.xlu0 %v348, 48
        %v581 = vpop.permute.xlu0 %580
        %v583 = vsel %vm351, %v579, 0
        %v586 = vsel %vm402, %v581, 0
        %588 = vmatpush.bf16.msra.mxu0 0
        %589 = vmatpush.bf16.msra.mxu0 0
        %590 = vmatpush.bf16.msra.mxu0 0
        %591 = vmatpush.bf16.msra.mxu0 0
        %592 = vmatpush.bf16.msra.mxu0 0
        %593 = vmatpush.bf16.msra.mxu0 0
        %594 = vmatpush.bf16.msra.mxu0 0
        %595 = vmatpush.bf16.msra.mxu0 %v586
        %596 = vmatmul.bf16.gmra.mxu0 %v583
        %v597 = vpop.f32.mrf.mxu0
        %v598 = vadd.f32 0.0, %v597
        %v599 = vpop.f32.mrf.mxu0
        %600 = vdwg.mxu0
        %v601 = vpack.c.bf16 %v598, %v598
        %v602 = vld [vmem:[#allocation7 + $0x8] sm:$0xf]
        %v604 = vsel %vm351, %v601, 0
        %v607 = vsel %vm402, %v602, 0
        %609 = vmatpush.bf16.msra.mxu0 0
        %610 = vmatpush.bf16.msra.mxu0 0
        %611 = vmatpush.bf16.msra.mxu0 0
        %612 = vmatpush.bf16.msra.mxu0 0
        %613 = vmatpush.bf16.msra.mxu0 0
        %614 = vmatpush.bf16.msra.mxu0 0
        %615 = vmatpush.bf16.msra.mxu0 0
        %616 = vmatpush.bf16.msra.mxu0 %v607
        %617 = vmatmul.bf16.gmra.mxu0 %v604
        %v618 = vpop.f32.mrf.mxu0
        %v619 = vadd.f32 0.0, %v618
        %v620 = vpop.f32.mrf.mxu0
        %621 = vdwg.mxu0
        %v622 = vadd.f32 %v528, %v619
        %623 = vrot.lane.b32.xlu0 %v348, 104
        %v624 = vpop.permute.xlu0 %623
        %625 = vrot.lane.b32.xlu0 %v348, 72
        %v626 = vpop.permute.xlu0 %625
        %v628 = vsel %vm351, %v624, 0
        %v631 = vsel %vm351, %v626, 0
        %633 = vmatpush.bf16.xpose.msra.mxu0 0
        %634 = vmatpush.bf16.xpose.msra.mxu0 0
        %635 = vmatpush.bf16.xpose.msra.mxu0 0
        %636 = vmatpush.bf16.xpose.msra.mxu0 0
        %637 = vmatpush.bf16.xpose.msra.mxu0 0
        %638 = vmatpush.bf16.xpose.msra.mxu0 0
        %639 = vmatpush.bf16.xpose.msra.mxu0 0
        %640 = vmatpush.bf16.xpose.msra.mxu0 %v631
        %641 = vmatmul.bf16.gmra.mxu0 %v628
        %v642 = vpop.f32.mrf.mxu0
        %v643 = vadd.f32 0.0, %v642
        %v644 = vpop.f32.mrf.mxu0
        %645 = vdwg.mxu0
        %v646 = vsel %vm351, %v643, -inf
        %647 = vmax.xlane.f32.xlu0 %v646
        %v648 = vpop.xlane.xlu0 %647
        %v649 = vsub.f32 %v643, %v648
        %v650 = vmul.f32 %v649, 1.442695
        %v651 = vpow.pop %v650
        %v652 = vsel %vm351, %v651, 0.0
        %653 = vadd.xlane.f32.xlu0 %v652
        %v654 = vpop.xlane.xlu0 %653
        %v655 = vrcp.pop %v654
        %v656 = vmul.f32 %v654, %v655
        %v657 = vsub.f32 1.0, %v656
        %v658 = vmul.f32 %v655, %v657
        %v659 = vadd.f32 %v655, %v658
        %vm660 = vweird.f32 %v654
        %vm661 = vweird.f32 %v655
        %vm662 = vmor %vm660, %vm661
        %v663 = vsel %vm662, %v655, %v659
        %v664 = vand.u32 2147483647, %v654
        %vm665 = vcmp.eq.f32.partialorder %v664, 8.507059e+37
        %v666 = vand.u32 %v654, 2147483648
        %v667 = vor.u32 1.1754944e-38, %v666
        %v668 = vsel %vm665, %v667, %v663
        %v669 = vmul.f32 %v651, %v668
        %v670 = vadd.f32 %v578, %v669
        %v671 = vpack.c.bf16 %v669, %v669
        %672 = vrot.lane.b32.xlu0 %v348, 40
        %v673 = vpop.permute.xlu0 %672
        %v675 = vsel %vm351, %v671, 0
        %v678 = vsel %vm402, %v673, 0
        %680 = vmatpush.bf16.msra.mxu0 0
        %681 = vmatpush.bf16.msra.mxu0 0
        %682 = vmatpush.bf16.msra.mxu0 0
        %683 = vmatpush.bf16.msra.mxu0 0
        %684 = vmatpush.bf16.msra.mxu0 0
        %685 = vmatpush.bf16.msra.mxu0 0
        %686 = vmatpush.bf16.msra.mxu0 0
        %687 = vmatpush.bf16.msra.mxu0 %v678
        %688 = vmatmul.bf16.gmra.mxu0 %v675
        %v689 = vpop.f32.mrf.mxu0
        %v690 = vadd.f32 0.0, %v689
        %v691 = vpop.f32.mrf.mxu0
        %692 = vdwg.mxu0
        %v693 = vpack.c.bf16 %v690, %v690
        %v694 = vld [vmem:[#allocation7 + $0xc] sm:$0xf]
        %v696 = vsel %vm351, %v693, 0
        %v699 = vsel %vm402, %v694, 0
        %701 = vmatpush.bf16.msra.mxu0 0
        %702 = vmatpush.bf16.msra.mxu0 0
        %703 = vmatpush.bf16.msra.mxu0 0
        %704 = vmatpush.bf16.msra.mxu0 0
        %705 = vmatpush.bf16.msra.mxu0 0
        %706 = vmatpush.bf16.msra.mxu0 0
        %707 = vmatpush.bf16.msra.mxu0 0
        %708 = vmatpush.bf16.msra.mxu0 %v699
        %709 = vmatmul.bf16.gmra.mxu0 %v696
        %v710 = vpop.f32.mrf.mxu0
        %v711 = vadd.f32 0.0, %v710
        %v712 = vpop.f32.mrf.mxu0
        %713 = vdwg.mxu0
        %v714 = vadd.f32 %v622, %v711
        %v715 = vld [vmem:[%s4] sm:$0x1]
        %v717 = vperm.slane %v715, 0
        %v719 = vadd.f32 %v714, %v717
        %vm720 = vcmask 261120
        %721 = vst.msk [vmem:[%s305] sm:$0xff] %vm720, %v719
        %v722 = vmul.f32 %v670, 0.25
        %723 = vst.msk [vmem:[%s312] sm:$0xff] %vm351, %v722
        %s724 = sand.u32 %s146, 1
        %s725 = scalar_lea.sflag [#allocation4], %s724
        %s726 = sand.u32 %s146, 1
        %s727 = smul.addr %s726, 8
        %s728 = scalar_lea.vmem [#allocation8], %s727
        %s729 = sand.u32 %s172, 1
        %s730 = scalar_lea.sflag [#allocation10], %s729
        %s731 = sand.u32 %s172, 1
        %s732 = smul.addr %s731, 8
        %s733 = scalar_lea.vmem [#allocation9], %s732
        // Predicated region
        $region53: #{tpu_custom_call.1} parent=39 // pred_check
          %p734 = pneg %p156
        $region54: #{tpu_custom_call.1} parent=39 // pred_check_branch
          %736 = sbr.rel (%p734) target = $region56
        $region55: #{tpu_custom_call.1} parent=39 // pred_region
          %738 = vsyncadd %s725, 0
          %s739 = smul.addr %s28, 8
          %s740 = scalar_lea.hbm %s5, %s739
          %s742 = sshll.u32 %s728, 4
          %s743 = int_to_ptr.vmem [resolvable:$true] %s742
          %s744 = sshll.u32 %s740, 4
          %s745 = int_to_ptr.hbm [resolvable:$true] %s744
          %747 = dma.vmem_to_hbm [thread:$0]  %s743, 128, %s745, %s725
        $region56: #{tpu_custom_call.1} parent=39 // pred_fallthru
          _
        // Predicated region
        $region57: #{tpu_custom_call.1} parent=39 // pred_check
          %p748 = pneg %p182
        $region58: #{tpu_custom_call.1} parent=39 // pred_check_branch
          %750 = sbr.rel (%p748) target = $region60
        $region59: #{tpu_custom_call.1} parent=39 // pred_region
          %752 = vsyncadd %s730, 0
          %s753 = smul.addr %s28, 8
          %s754 = scalar_lea.hbm %s6, %s753
          %s756 = sshll.u32 %s733, 4
          %s757 = int_to_ptr.vmem [resolvable:$true] %s756
          %s758 = sshll.u32 %s754, 4
          %s759 = int_to_ptr.hbm [resolvable:$true] %s758
          %761 = dma.vmem_to_hbm [thread:$0]  %s757, 128, %s759, %s730
        $region60: #{tpu_custom_call.1} parent=39 // pred_fallthru
          _
      $region40: #{tpu_custom_call.1} parent=5 // pred_fallthru
        _
      %p762 = scmp.le.s32.totalorder 2, %s23
      // Predicated region
      $region61: #{tpu_custom_call.1} parent=5 // pred_check
        %p763 = pneg %p762
      $region62: #{tpu_custom_call.1} parent=5 // pred_check_branch
        %765 = sbr.rel (%p763) target = $region64
      $region63: #{tpu_custom_call.1} parent=5 // pred_region
        %s766 = ssub.s32 %s23, 2
        // Predicated region
        $region65: #{tpu_custom_call.1} parent=63 // pred_check
          %p767 = pneg %p162
        $region66: #{tpu_custom_call.1} parent=63 // pred_check_branch
          %769 = sbr.rel (%p767) target = $region68
        $region67: #{tpu_custom_call.1} parent=63 // pred_region
          %s770 = sand.u32 %s147, 1
          %s771 = scalar_lea.sflag [#allocation4], %s770
          %s772 = sand.u32 %s147, 1
          %s773 = smul.addr %s772, 8
          %s774 = scalar_lea.vmem [#allocation8], %s773
          %776 = dma.done %s771, 128
        $region68: #{tpu_custom_call.1} parent=63 // pred_fallthru
          _
        // Predicated region
        $region69: #{tpu_custom_call.1} parent=63 // pred_check
          %p777 = pneg %p188
        $region70: #{tpu_custom_call.1} parent=63 // pred_check_branch
          %779 = sbr.rel (%p777) target = $region72
        $region71: #{tpu_custom_call.1} parent=63 // pred_region
          %s780 = sand.u32 %s173, 1
          %s781 = scalar_lea.sflag [#allocation10], %s780
          %s782 = sand.u32 %s173, 1
          %s783 = smul.addr %s782, 8
          %s784 = scalar_lea.vmem [#allocation9], %s783
          %786 = dma.done %s781, 128
        $region72: #{tpu_custom_call.1} parent=63 // pred_fallthru
          _
      $region64: #{tpu_custom_call.1} parent=5 // pred_fallthru
        _
    $region6: #{tpu_custom_call.1} parent=1 // loop_footer
      %s27 = sadd.s32 1, %s23
    $region7: #{tpu_custom_call.1} parent=1 // loop_footer_branch
      %22 = sbr.rel target = $region3
    $region8: #{tpu_custom_call.1} parent=1 // loop_exit
      _
    %787 = vsyncpa [#allocation3], 1
    %s788 = scalar_lea.sflag [#allocation3], 1
    %789 = vsyncpa %s788, 1
    %790 = vsyncpa [#allocation6], 1
    %791 = vsyncpa [#allocation4], 1
    %s792 = scalar_lea.sflag [#allocation4], 1
    %793 = vsyncpa %s792, 1
    %794 = vsyncpa [#allocation10], 1
    %s795 = scalar_lea.sflag [#allocation10], 1
    %796 = vsyncpa %s795, 1

</llo_original>
